<compile_context>
chip_gen: v7x
topology: tpu7x:2x2x1
jax: 0.10.0
libtpu: 0.0.40
codegen_flags: <defaults>
</compile_context>

<pallas_src>
import jax
import jax.numpy as jnp
from jax.experimental import pallas as pl
from jax.experimental.pallas import tpu as pltpu


def _linear_add_relu_kernel(x_ref, wt_ref, b_ref, o_ref):
    # x_ref:  (TB, F)   natural row-major batch tile
    # wt_ref: (F, OUT)  weight^T, VMEM-resident across the grid
    # b_ref:  (1, OUT)  bias, VMEM-resident
    # o_ref:  (TB, OUT)
    x = x_ref[...]
    y = jnp.dot(
        x,
        wt_ref[...],
        preferred_element_type=jnp.float32,
        precision=jax.lax.Precision.HIGHEST,
    )                                   # (TB, OUT)
    y = y + b_ref[...] + x              # residual add (F == OUT)
    o_ref[...] = jnp.maximum(y, 0.0).astype(o_ref.dtype)


def model_forward(x, weight, bias, *, row_tile=8192):
    """Fused Linear + residual + ReLU.

    x:      (B, F)   f32
    weight: (OUT, F) f32  (torch layout: out_features x in_features)
    bias:   (OUT,)   f32
    returns (B, OUT) f32
    """
    B, F = x.shape
    OUT, F_w = weight.shape
    assert F_w == F and OUT == F, "residual t1 + x1 requires size == out_features"

    wt = weight.T                 # (F, OUT), tiny one-time relayout
    b2d = bias.reshape(1, OUT)    # broadcasts over rows in-kernel

    # Row tile: full batch in one block when it fits, otherwise large balanced
    # blocks (multiple of 8 sublanes).  No explicit padding: Pallas handles
    # the ragged last block, and padded rows are never written back.
    if B <= row_tile:
        tb = B
        grid_n = 1
    else:
        grid_n = pl.cdiv(B, row_tile)
        rows_per_step = (B + grid_n - 1) // grid_n
        tb = ((rows_per_step + 7) // 8) * 8
        grid_n = pl.cdiv(B, tb)

    cost = pl.CostEstimate(
        flops=2 * B * F * OUT + 3 * B * OUT,
        transcendentals=0,
        bytes_accessed=4 * (B * F + OUT * F + OUT + B * OUT),
    )

    out = pl.pallas_call(
        _linear_add_relu_kernel,
        out_shape=jax.ShapeDtypeStruct((B, OUT), x.dtype),
        grid=(grid_n,),
        in_specs=[
            pl.BlockSpec((tb, F), lambda i: (i, 0)),     # x tile, streamed
            pl.BlockSpec((F, OUT), lambda i: (0, 0)),    # weight^T, resident
            pl.BlockSpec((1, OUT), lambda i: (0, 0)),    # bias, resident
        ],
        out_specs=pl.BlockSpec((tb, OUT), lambda i: (i, 0)),
        compiler_params=pltpu.CompilerParams(
            dimension_semantics=("parallel",),           # megacore on v7x
            vmem_limit_bytes=32 * 1024 * 1024,           # ~16 MiB used at tb=8192
        ),
        cost_estimate=cost,
    )(x, wt, b2d)

    return out


if __name__ == "__main__":
    # Shapes consistent with the module: size = 10 (required so t1 + x1
    # broadcasts), module-spec batch = 16.
    SIZE, OUT = 10, 10

    key = jax.random.PRNGKey(0)
    kx, kw, kb, kx2 = jax.random.split(key, 4)

    # PyTorch-style uniform(-1/sqrt(fan_in), 1/sqrt(fan_in)) init.
    bound = 1.0 / float(SIZE) ** 0.5
    weight = jax.random.uniform(kw, (OUT, SIZE), jnp.float32, -bound, bound)
    bias = jax.random.uniform(kb, (OUT,), jnp.float32, -bound, bound)

    def ref_fn(x):
        return jnp.maximum(x @ weight.T + bias[None, :] + x, 0.0)

    # 1) Module-spec batch (16): single block, single launch, no relayout.
    x_small = jax.random.normal(kx, (16, SIZE), dtype=jnp.float32)
    out_small = jax.block_until_ready(model_forward(x_small, weight, bias))
    assert out_small.shape == (16, OUT)
    assert jnp.allclose(out_small, ref_fn(x_small), atol=1e-5, rtol=1e-5), \
        "mismatch vs reference (B=16)"

    # 2) Larger batch exercising the multi-step grid with a ragged last block
    #    (20000 rows -> 3 grid steps at tb=6672) and resident weight/bias.
    x_big = jax.random.normal(kx2, (20000, SIZE), dtype=jnp.float32)
    out_big = jax.block_until_ready(model_forward(x_big, weight, bias))
    assert out_big.shape == (20000, OUT)
    assert jnp.allclose(out_big, ref_fn(x_big), atol=1e-5, rtol=1e-5), \
        "mismatch vs reference (B=20000)"

    print("KERNEL_OK")
</pallas_src>

<mosaic_0001>
module attributes {stable_mosaic.version = 11 : i64} {
  func.func @_linear_add_relu_kernel(%arg0: i32, %arg1: memref<16x10xf32, #tpu.memory_space<vmem>>, %arg2: memref<10x10xf32, #tpu.memory_space<vmem>>, %arg3: memref<1x10xf32, #tpu.memory_space<vmem>>, %arg4: memref<16x10xf32, #tpu.memory_space<vmem>>) attributes {dimension_semantics = [#tpu.dimension_semantics<parallel>], iteration_bounds = array<i64: 1>, scalar_prefetch = 0 : i64, scratch_operands = 0 : i64, tpu.core_type = #tpu.core_type<tc>, window_params = [{transform_indices = @transform_0, window_bounds = array<i64: 16, 10>}, {pipeline_mode = #tpu.pipeline_mode<synchronous>, transform_indices = @transform_1, window_bounds = array<i64: 10, 10>}, {pipeline_mode = #tpu.pipeline_mode<synchronous>, transform_indices = @transform_2, window_bounds = array<i64: 1, 10>}, {transform_indices = @transform_3, window_bounds = array<i64: 16, 10>}]} {
    %c0 = arith.constant 0 : index
    %c0_0 = arith.constant 0 : index
    %0 = vector.load %arg1[%c0, %c0_0] : memref<16x10xf32, #tpu.memory_space<vmem>>, vector<16x10xf32>
    %c0_1 = arith.constant 0 : index
    %c0_2 = arith.constant 0 : index
    %1 = vector.load %arg2[%c0_1, %c0_2] : memref<10x10xf32, #tpu.memory_space<vmem>>, vector<10x10xf32>
    %cst = arith.constant dense<0.000000e+00> : vector<16x10xf32>
    %2 = tpu.matmul %0, %1, %cst {dimension_numbers = #tpu.dot_dimension_numbers<[1], [0], [0], [1], [0, 0, 1, 1], [], []>, precision = #tpu.contract_precision<fp32>} : vector<16x10xf32>, vector<10x10xf32>, vector<16x10xf32> -> vector<16x10xf32>
    %c0_3 = arith.constant 0 : index
    %c0_4 = arith.constant 0 : index
    %3 = vector.load %arg3[%c0_3, %c0_4] : memref<1x10xf32, #tpu.memory_space<vmem>>, vector<1x10xf32>
    %4 = vector.broadcast %3 : vector<1x10xf32> to vector<16x10xf32>
    %5 = arith.addf %2, %4 : vector<16x10xf32>
    %6 = arith.addf %5, %0 : vector<16x10xf32>
    %cst_5 = arith.constant 0.000000e+00 : f32
    %7 = vector.broadcast %cst_5 : f32 to vector<16x10xf32>
    %8 = arith.maximumf %6, %7 : vector<16x10xf32>
    %c0_6 = arith.constant 0 : index
    %c0_7 = arith.constant 0 : index
    %9 = vector.load %arg4[%c0_6, %c0_7] : memref<16x10xf32, #tpu.memory_space<vmem>>, vector<16x10xf32>
    tpu.vector_store %arg4[%c0_6, %c0_7], %8 {strides = array<i32>} : memref<16x10xf32, #tpu.memory_space<vmem>>, vector<16x10xf32>,
    return
  }
  func.func @transform_0(%arg0: i32) -> (i32, i32) {
    %c0_i32 = arith.constant 0 : i32
    %c0_i32_0 = arith.constant 0 : i32
    return %arg0, %c0_i32 : i32, i32
  }
  func.func @transform_1(%arg0: i32) -> (i32, i32) {
    %c0_i32 = arith.constant 0 : i32
    %c0_i32_0 = arith.constant 0 : i32
    %c0_i32_1 = arith.constant 0 : i32
    return %c0_i32, %c0_i32_0 : i32, i32
  }
  func.func @transform_2(%arg0: i32) -> (i32, i32) {
    %c0_i32 = arith.constant 0 : i32
    %c0_i32_0 = arith.constant 0 : i32
    %c0_i32_1 = arith.constant 0 : i32
    return %c0_i32, %c0_i32_0 : i32, i32
  }
  func.func @transform_3(%arg0: i32) -> (i32, i32) {
    %c0_i32 = arith.constant 0 : i32
    %c0_i32_0 = arith.constant 0 : i32
    return %arg0, %c0_i32 : i32, i32
  }
}

</mosaic_0001>

<llo_original>
// kernel: tpu_custom_call.1
$region0: #{tpu_custom_call.1}
  #allocation0 [shape = 'u32[]', space=smem, size = 0x4, offset = 0x4, fixed_abs, tag = 'smem constant byte address 0x4 - core index']
  #allocation1 [shape = 'u32[144,128]{1,0:T(1,128)}', space=vmem, size = 0x12000, scoped, tag = 'internal scratch']
  %s0 = inlined_call_operand.hbm [shape: f32[16,10], index: 0, kind: input, shape index: {}]
  %s1 = inlined_call_operand.hbm [shape: f32[10,10], index: 1, kind: input, shape index: {}]
  %s2 = inlined_call_operand.vmem [shape: f32[1,10], index: 2, kind: input, shape index: {}]
  %s3 = inlined_call_operand.hbm [shape: f32[16,10], index: 3, kind: output, shape index: {}]
  %s4 = sld [smem:[#allocation0]]
  $region30: #{tpu_custom_call.1} parent=0
    _
  %s6 = ssub.s32 1, %s4
  %s7 = scalar_select 0, %s6, %s4
  $region1: #{tpu_custom_call.1} parent=0
    #allocation2 [shape = 'u8[8192]{0}', space=vmem, size = 0x2000, scoped, tag = 'input window, operand 0, single buffered']
    #allocation3 [shape = 's32[1]{0}', space=sflag, size = 0x4, scoped, tag = 'scoped memory for tpu_custom_call.1']
    #allocation4 [shape = 's32[1]{0}', space=sflag, size = 0x4, scoped, tag = 'scoped memory for tpu_custom_call.1']
    #allocation5 [shape = 'u8[8192]{0}', space=vmem, size = 0x2000, scoped, tag = 'input window, operand 1, single buffered']
    #allocation6 [shape = 's32[1]{0}', space=sflag, size = 0x4, scoped, tag = 'scoped memory for tpu_custom_call.1']
    #allocation7 [shape = 'u8[8192]{0}', space=vmem, size = 0x2000, scoped, tag = 'output window, operand 0, single buffered']
    %8 = vsyncpa [#allocation3], 0
    %9 = vsyncpa [#allocation6], 0
    %10 = vsyncpa [#allocation4], 0
    // Predicated region
    $region2: #{tpu_custom_call.1} parent=1 // pred_check
      _
    $region3: #{tpu_custom_call.1} parent=1 // pred_check_branch
      %12 = sbr.rel (0) target = $region5
    $region4: #{tpu_custom_call.1} parent=1 // pred_region
      %s14 = ssub.s32 256, 256
      %15 = vsyncadd [#allocation3], %s14
      %s16 = sshll.u32 [#allocation2], 4
      %s17 = int_to_ptr.vmem [resolvable:$true] %s16
      %22 = dma.hbm_to_vmem [thread:$0]  %s0, 256, %s17, [#allocation3], 128, 128, 8
    $region5: #{tpu_custom_call.1} parent=1 // pred_fallthru
      _
    // Predicated region
    $region6: #{tpu_custom_call.1} parent=1 // pred_check
      _
    $region7: #{tpu_custom_call.1} parent=1 // pred_check_branch
      %24 = sbr.rel (0) target = $region9
    $region8: #{tpu_custom_call.1} parent=1 // pred_region
      %s26 = ssub.s32 256, 256
      %27 = vsyncadd [#allocation6], %s26
      %s28 = sshll.u32 [#allocation5], 4
      %s29 = int_to_ptr.vmem [resolvable:$true] %s28
      %34 = dma.hbm_to_vmem [thread:$0]  %s1, 256, %s29, [#allocation6], 128, 128, 8
    $region9: #{tpu_custom_call.1} parent=1 // pred_fallthru
      _
    // Predicated region
    $region10: #{tpu_custom_call.1} parent=1 // pred_check
      _
    $region11: #{tpu_custom_call.1} parent=1 // pred_check_branch
      %36 = sbr.rel (0) target = $region13
    $region12: #{tpu_custom_call.1} parent=1 // pred_region
      _
    $region13: #{tpu_custom_call.1} parent=1 // pred_fallthru
      _
    // Predicated region
    $region14: #{tpu_custom_call.1} parent=1 // pred_check
      _
    $region15: #{tpu_custom_call.1} parent=1 // pred_check_branch
      %38 = sbr.rel (0) target = $region17
    $region16: #{tpu_custom_call.1} parent=1 // pred_region
      %39 = dma.done [#allocation3], 256
    $region17: #{tpu_custom_call.1} parent=1 // pred_fallthru
      _
    // Predicated region
    $region18: #{tpu_custom_call.1} parent=1 // pred_check
      _
    $region19: #{tpu_custom_call.1} parent=1 // pred_check_branch
      %41 = sbr.rel (0) target = $region21
    $region20: #{tpu_custom_call.1} parent=1 // pred_region
      %42 = dma.done [#allocation6], 256
    $region21: #{tpu_custom_call.1} parent=1 // pred_fallthru
      _
    %v43 = vld [vmem:[#allocation2] sm:$0xff]
    %v44 = vld [vmem:[#allocation2 + $0x8] sm:$0xff]
    %v45 = vld [vmem:[#allocation5] sm:$0xff]
    %v46 = vld [vmem:[#allocation5 + $0x8] sm:$0x3]
    %v47 = vld [vmem:[%s2] sm:$0x1]
    %v49 = vlaneseq
    %v50 = vshrl.u32 %v49, 7
    %v51 = vsub.s32 0, %v50
    %v52 = vrot.slane %v47, %v51
    %vm54 = vcmask 80896
    %v56 = vsel %vm54, %v43, 0
    %v59 = vsel %vm54, %v44, 0
    %vm61 = vcmask 1041408
    %v63 = vsel %vm61, %v46, 0
    %65 = vmatprep.subr.mxu0 0.0
    %v66 = vand.u32 %v45, 4294901760
    %67 = vmatpush1.msra.mxu0 %v66
    %68 = vmatprep.subr.mxu0 0.0
    %v69 = vand.u32 %v63, 4294901760
    %70 = vmatpush1.msra.mxu0 %v69
    %71 = vmatprep.subr.mxu0 0.0
    %72 = vmatpush1.msra.mxu0 0.0
    %73 = vmatprep.subr.mxu0 0.0
    %74 = vmatpush1.msra.mxu0 0.0
    %75 = vmatprep.subr.mxu0 0.0
    %76 = vmatpush1.msra.mxu0 0.0
    %77 = vmatprep.subr.mxu0 0.0
    %78 = vmatpush1.msra.mxu0 0.0
    %79 = vmatprep.subr.mxu0 0.0
    %80 = vmatpush1.msra.mxu0 0.0
    %81 = vmatprep.subr.mxu0 0.0
    %82 = vmatpush1.msra.mxu0 0.0
    %83 = vmatprep.subr.mxu0 0.0
    %84 = vmatpush1.msra.mxu0 0.0
    %85 = vmatprep.subr.mxu0 0.0
    %86 = vmatpush1.msra.mxu0 0.0
    %87 = vmatprep.subr.mxu0 0.0
    %88 = vmatpush1.msra.mxu0 0.0
    %89 = vmatprep.subr.mxu0 0.0
    %90 = vmatpush1.msra.mxu0 0.0
    %91 = vmatprep.subr.mxu0 0.0
    %92 = vmatpush1.msra.mxu0 0.0
    %93 = vmatprep.subr.mxu0 0.0
    %94 = vmatpush1.msra.mxu0 0.0
    %95 = vmatprep.subr.mxu0 0.0
    %96 = vmatpush1.msra.mxu0 0.0
    %97 = vmatprep.subr.mxu0 0.0
    %98 = vmatpush1.msra.mxu0 0.0
    %99 = vmatprep.subr.mxu0 0.0
    %100 = vmatpush1.msra.mxu0 0.0
    %101 = vmatprep.subr.mxu0 0.0
    %102 = vmatpush1.msra.mxu0 0.0
    %103 = vmatprep.subr.mxu0 0.0
    %104 = vmatpush1.msra.mxu0 0.0
    %105 = vmatprep.subr.mxu0 0.0
    %106 = vmatpush1.msra.mxu0 0.0
    %107 = vmatprep.subr.mxu0 0.0
    %108 = vmatpush1.msra.mxu0 0.0
    %109 = vmatprep.subr.mxu0 0.0
    %110 = vmatpush1.msra.mxu0 0.0
    %111 = vmatprep.subr.mxu0 0.0
    %112 = vmatpush1.msra.mxu0 0.0
    %113 = vmatprep.subr.mxu0 0.0
    %114 = vmatpush1.msra.mxu0 0.0
    %115 = vmatprep.subr.mxu0 0.0
    %116 = vmatpush1.msra.mxu0 0.0
    %117 = vmatprep.subr.mxu0 0.0
    %118 = vmatpush1.msra.mxu0 0.0
    %119 = vmatprep.subr.mxu0 0.0
    %120 = vmatpush1.msra.mxu0 0.0
    %121 = vmatprep.subr.mxu0 0.0
    %122 = vmatpush1.msra.mxu0 0.0
    %123 = vmatprep.subr.mxu0 0.0
    %124 = vmatpush1.msra.mxu0 0.0
    %125 = vmatprep.subr.mxu0 0.0
    %126 = vmatpush1.msra.mxu0 0.0
    %127 = vmatprep.subr.mxu0 0.0
    %128 = vmatpush1.msra.mxu0 0.0
    %129 = vmatprep.subr.mxu0 0.0
    %130 = vmatpush1.msra.mxu0 0.0
    %131 = vmatprep.mubr.f32.mxu0 0.0
    %v132 = vand.u32 %v56, 4294901760
    %v133 = vsub.f32 %v56, %v132
    %v134 = vand.u32 %v133, 4294901760
    %v135 = vsub.f32 %v133, %v134
    %v136 = vand.u32 %v135, 4294901760
    %137 = vmatmul.mubr.f32.gmra.mrb[0].mxu0 %v136
    %v138 = vpop.f32.mrb[0].mxu0
    %v139 = vadd.f32 %v52, %v138
    %v140 = vpop.f32.mrb[0].mxu0
    %141 = vmatprep.mubr.f32.mxu0 0.0
    %v142 = vand.u32 %v59, 4294901760
    %v143 = vsub.f32 %v59, %v142
    %v144 = vand.u32 %v143, 4294901760
    %v145 = vsub.f32 %v143, %v144
    %v146 = vand.u32 %v145, 4294901760
    %147 = vmatmul.mubr.f32.gmra.mrb[0].mxu0 %v146
    %v148 = vpop.f32.mrb[0].mxu0
    %v149 = vadd.f32 %v52, %v148
    %v150 = vpop.f32.mrb[0].mxu0
    %151 = vdwg.mxu0
    %152 = vmatprep.subr.mxu0 0.0
    %v153 = vand.u32 %v45, 4294901760
    %v154 = vsub.f32 %v45, %v153
    %v155 = vand.u32 %v154, 4294901760
    %v156 = vsub.f32 %v154, %v155
    %v157 = vand.u32 %v156, 4294901760
    %158 = vmatpush1.msra.mxu0 %v157
    %159 = vmatprep.subr.mxu0 0.0
    %v160 = vand.u32 %v63, 4294901760
    %v161 = vsub.f32 %v63, %v160
    %v162 = vand.u32 %v161, 4294901760
    %v163 = vsub.f32 %v161, %v162
    %v164 = vand.u32 %v163, 4294901760
    %165 = vmatpush1.msra.mxu0 %v164
    %166 = vmatprep.subr.mxu0 0.0
    %167 = vmatpush1.msra.mxu0 0.0
    %168 = vmatprep.subr.mxu0 0.0
    %169 = vmatpush1.msra.mxu0 0.0
    %170 = vmatprep.subr.mxu0 0.0
    %171 = vmatpush1.msra.mxu0 0.0
    %172 = vmatprep.subr.mxu0 0.0
    %173 = vmatpush1.msra.mxu0 0.0
    %174 = vmatprep.subr.mxu0 0.0
    %175 = vmatpush1.msra.mxu0 0.0
    %176 = vmatprep.subr.mxu0 0.0
    %177 = vmatpush1.msra.mxu0 0.0
    %178 = vmatprep.subr.mxu0 0.0
    %179 = vmatpush1.msra.mxu0 0.0
    %180 = vmatprep.subr.mxu0 0.0
    %181 = vmatpush1.msra.mxu0 0.0
    %182 = vmatprep.subr.mxu0 0.0
    %183 = vmatpush1.msra.mxu0 0.0
    %184 = vmatprep.subr.mxu0 0.0
    %185 = vmatpush1.msra.mxu0 0.0
    %186 = vmatprep.subr.mxu0 0.0
    %187 = vmatpush1.msra.mxu0 0.0
    %188 = vmatprep.subr.mxu0 0.0
    %189 = vmatpush1.msra.mxu0 0.0
    %190 = vmatprep.subr.mxu0 0.0
    %191 = vmatpush1.msra.mxu0 0.0
    %192 = vmatprep.subr.mxu0 0.0
    %193 = vmatpush1.msra.mxu0 0.0
    %194 = vmatprep.subr.mxu0 0.0
    %195 = vmatpush1.msra.mxu0 0.0
    %196 = vmatprep.subr.mxu0 0.0
    %197 = vmatpush1.msra.mxu0 0.0
    %198 = vmatprep.subr.mxu0 0.0
    %199 = vmatpush1.msra.mxu0 0.0
    %200 = vmatprep.subr.mxu0 0.0
    %201 = vmatpush1.msra.mxu0 0.0
    %202 = vmatprep.subr.mxu0 0.0
    %203 = vmatpush1.msra.mxu0 0.0
    %204 = vmatprep.subr.mxu0 0.0
    %205 = vmatpush1.msra.mxu0 0.0
    %206 = vmatprep.subr.mxu0 0.0
    %207 = vmatpush1.msra.mxu0 0.0
    %208 = vmatprep.subr.mxu0 0.0
    %209 = vmatpush1.msra.mxu0 0.0
    %210 = vmatprep.subr.mxu0 0.0
    %211 = vmatpush1.msra.mxu0 0.0
    %212 = vmatprep.subr.mxu0 0.0
    %213 = vmatpush1.msra.mxu0 0.0
    %214 = vmatprep.subr.mxu0 0.0
    %215 = vmatpush1.msra.mxu0 0.0
    %216 = vmatprep.subr.mxu0 0.0
    %217 = vmatpush1.msra.mxu0 0.0
    %218 = vmatprep.subr.mxu0 0.0
    %219 = vmatpush1.msra.mxu0 0.0
    %220 = vmatprep.subr.mxu0 0.0
    %221 = vmatpush1.msra.mxu0 0.0
    %222 = vmatprep.subr.mxu0 0.0
    %223 = vmatpush1.msra.mxu0 0.0
    %224 = vmatprep.subr.mxu0 0.0
    %225 = vmatpush1.msra.mxu0 0.0
    %226 = vmatprep.mubr.f32.mxu0 0.0
    %v227 = vand.u32 %v56, 4294901760
    %228 = vmatmul.mubr.f32.gmra.mrb[0].mxu0 %v227
    %v229 = vpop.f32.mrb[0].mxu0
    %v230 = vadd.f32 %v139, %v229
    %v231 = vpop.f32.mrb[0].mxu0
    %232 = vmatprep.mubr.f32.mxu0 0.0
    %v233 = vand.u32 %v59, 4294901760
    %234 = vmatmul.mubr.f32.gmra.mrb[0].mxu0 %v233
    %v235 = vpop.f32.mrb[0].mxu0
    %v236 = vadd.f32 %v149, %v235
    %v237 = vpop.f32.mrb[0].mxu0
    %238 = vdwg.mxu0
    %239 = vmatprep.subr.mxu0 0.0
    %v240 = vand.u32 %v45, 4294901760
    %v241 = vsub.f32 %v45, %v240
    %242 = vmatpush1.msra.mxu0 %v241
    %243 = vmatprep.subr.mxu0 0.0
    %v244 = vand.u32 %v63, 4294901760
    %v245 = vsub.f32 %v63, %v244
    %246 = vmatpush1.msra.mxu0 %v245
    %247 = vmatprep.subr.mxu0 0.0
    %248 = vmatpush1.msra.mxu0 0.0
    %249 = vmatprep.subr.mxu0 0.0
    %250 = vmatpush1.msra.mxu0 0.0
    %251 = vmatprep.subr.mxu0 0.0
    %252 = vmatpush1.msra.mxu0 0.0
    %253 = vmatprep.subr.mxu0 0.0
    %254 = vmatpush1.msra.mxu0 0.0
    %255 = vmatprep.subr.mxu0 0.0
    %256 = vmatpush1.msra.mxu0 0.0
    %257 = vmatprep.subr.mxu0 0.0
    %258 = vmatpush1.msra.mxu0 0.0
    %259 = vmatprep.subr.mxu0 0.0
    %260 = vmatpush1.msra.mxu0 0.0
    %261 = vmatprep.subr.mxu0 0.0
    %262 = vmatpush1.msra.mxu0 0.0
    %263 = vmatprep.subr.mxu0 0.0
    %264 = vmatpush1.msra.mxu0 0.0
    %265 = vmatprep.subr.mxu0 0.0
    %266 = vmatpush1.msra.mxu0 0.0
    %267 = vmatprep.subr.mxu0 0.0
    %268 = vmatpush1.msra.mxu0 0.0
    %269 = vmatprep.subr.mxu0 0.0
    %270 = vmatpush1.msra.mxu0 0.0
    %271 = vmatprep.subr.mxu0 0.0
    %272 = vmatpush1.msra.mxu0 0.0
    %273 = vmatprep.subr.mxu0 0.0
    %274 = vmatpush1.msra.mxu0 0.0
    %275 = vmatprep.subr.mxu0 0.0
    %276 = vmatpush1.msra.mxu0 0.0
    %277 = vmatprep.subr.mxu0 0.0
    %278 = vmatpush1.msra.mxu0 0.0
    %279 = vmatprep.subr.mxu0 0.0
    %280 = vmatpush1.msra.mxu0 0.0
    %281 = vmatprep.subr.mxu0 0.0
    %282 = vmatpush1.msra.mxu0 0.0
    %283 = vmatprep.subr.mxu0 0.0
    %284 = vmatpush1.msra.mxu0 0.0
    %285 = vmatprep.subr.mxu0 0.0
    %286 = vmatpush1.msra.mxu0 0.0
    %287 = vmatprep.subr.mxu0 0.0
    %288 = vmatpush1.msra.mxu0 0.0
    %289 = vmatprep.subr.mxu0 0.0
    %290 = vmatpush1.msra.mxu0 0.0
    %291 = vmatprep.subr.mxu0 0.0
    %292 = vmatpush1.msra.mxu0 0.0
    %293 = vmatprep.subr.mxu0 0.0
    %294 = vmatpush1.msra.mxu0 0.0
    %295 = vmatprep.subr.mxu0 0.0
    %296 = vmatpush1.msra.mxu0 0.0
    %297 = vmatprep.subr.mxu0 0.0
    %298 = vmatpush1.msra.mxu0 0.0
    %299 = vmatprep.subr.mxu0 0.0
    %300 = vmatpush1.msra.mxu0 0.0
    %301 = vmatprep.subr.mxu0 0.0
    %302 = vmatpush1.msra.mxu0 0.0
    %303 = vmatprep.subr.mxu0 0.0
    %304 = vmatpush1.msra.mxu0 0.0
    %305 = vmatprep.subr.mxu0 0.0
    %306 = vmatpush1.msra.mxu0 0.0
    %307 = vmatprep.mubr.f32.mxu0 0.0
    %v308 = vand.u32 %v56, 4294901760
    %v309 = vsub.f32 %v56, %v308
    %310 = vmatmul.mubr.f32.gmra.mrb[0].mxu0 %v309
    %v311 = vpop.f32.mrb[0].mxu0
    %v312 = vadd.f32 %v230, %v311
    %v313 = vpop.f32.mrb[0].mxu0
    %314 = vmatprep.mubr.f32.mxu0 0.0
    %v315 = vand.u32 %v59, 4294901760
    %v316 = vsub.f32 %v59, %v315
    %317 = vmatmul.mubr.f32.gmra.mrb[0].mxu0 %v316
    %v318 = vpop.f32.mrb[0].mxu0
    %v319 = vadd.f32 %v236, %v318
    %v320 = vpop.f32.mrb[0].mxu0
    %321 = vdwg.mxu0
    %322 = vmatprep.subr.mxu0 0.0
    %v323 = vand.u32 %v45, 4294901760
    %324 = vmatpush1.msra.mxu0 %v323
    %325 = vmatprep.subr.mxu0 0.0
    %v326 = vand.u32 %v63, 4294901760
    %327 = vmatpush1.msra.mxu0 %v326
    %328 = vmatprep.subr.mxu0 0.0
    %329 = vmatpush1.msra.mxu0 0.0
    %330 = vmatprep.subr.mxu0 0.0
    %331 = vmatpush1.msra.mxu0 0.0
    %332 = vmatprep.subr.mxu0 0.0
    %333 = vmatpush1.msra.mxu0 0.0
    %334 = vmatprep.subr.mxu0 0.0
    %335 = vmatpush1.msra.mxu0 0.0
    %336 = vmatprep.subr.mxu0 0.0
    %337 = vmatpush1.msra.mxu0 0.0
    %338 = vmatprep.subr.mxu0 0.0
    %339 = vmatpush1.msra.mxu0 0.0
    %340 = vmatprep.subr.mxu0 0.0
    %341 = vmatpush1.msra.mxu0 0.0
    %342 = vmatprep.subr.mxu0 0.0
    %343 = vmatpush1.msra.mxu0 0.0
    %344 = vmatprep.subr.mxu0 0.0
    %345 = vmatpush1.msra.mxu0 0.0
    %346 = vmatprep.subr.mxu0 0.0
    %347 = vmatpush1.msra.mxu0 0.0
    %348 = vmatprep.subr.mxu0 0.0
    %349 = vmatpush1.msra.mxu0 0.0
    %350 = vmatprep.subr.mxu0 0.0
    %351 = vmatpush1.msra.mxu0 0.0
    %352 = vmatprep.subr.mxu0 0.0
    %353 = vmatpush1.msra.mxu0 0.0
    %354 = vmatprep.subr.mxu0 0.0
    %355 = vmatpush1.msra.mxu0 0.0
    %356 = vmatprep.subr.mxu0 0.0
    %357 = vmatpush1.msra.mxu0 0.0
    %358 = vmatprep.subr.mxu0 0.0
    %359 = vmatpush1.msra.mxu0 0.0
    %360 = vmatprep.subr.mxu0 0.0
    %361 = vmatpush1.msra.mxu0 0.0
    %362 = vmatprep.subr.mxu0 0.0
    %363 = vmatpush1.msra.mxu0 0.0
    %364 = vmatprep.subr.mxu0 0.0
    %365 = vmatpush1.msra.mxu0 0.0
    %366 = vmatprep.subr.mxu0 0.0
    %367 = vmatpush1.msra.mxu0 0.0
    %368 = vmatprep.subr.mxu0 0.0
    %369 = vmatpush1.msra.mxu0 0.0
    %370 = vmatprep.subr.mxu0 0.0
    %371 = vmatpush1.msra.mxu0 0.0
    %372 = vmatprep.subr.mxu0 0.0
    %373 = vmatpush1.msra.mxu0 0.0
    %374 = vmatprep.subr.mxu0 0.0
    %375 = vmatpush1.msra.mxu0 0.0
    %376 = vmatprep.subr.mxu0 0.0
    %377 = vmatpush1.msra.mxu0 0.0
    %378 = vmatprep.subr.mxu0 0.0
    %379 = vmatpush1.msra.mxu0 0.0
    %380 = vmatprep.subr.mxu0 0.0
    %381 = vmatpush1.msra.mxu0 0.0
    %382 = vmatprep.subr.mxu0 0.0
    %383 = vmatpush1.msra.mxu0 0.0
    %384 = vmatprep.subr.mxu0 0.0
    %385 = vmatpush1.msra.mxu0 0.0
    %386 = vmatprep.subr.mxu0 0.0
    %387 = vmatpush1.msra.mxu0 0.0
    %388 = vmatprep.mubr.f32.mxu0 0.0
    %v389 = vand.u32 %v56, 4294901760
    %v390 = vsub.f32 %v56, %v389
    %v391 = vand.u32 %v390, 4294901760
    %392 = vmatmul.mubr.f32.gmra.mrb[0].mxu0 %v391
    %v393 = vpop.f32.mrb[0].mxu0
    %v394 = vadd.f32 %v312, %v393
    %v395 = vpop.f32.mrb[0].mxu0
    %396 = vmatprep.mubr.f32.mxu0 0.0
    %v397 = vand.u32 %v59, 4294901760
    %v398 = vsub.f32 %v59, %v397
    %v399 = vand.u32 %v398, 4294901760
    %400 = vmatmul.mubr.f32.gmra.mrb[0].mxu0 %v399
    %v401 = vpop.f32.mrb[0].mxu0
    %v402 = vadd.f32 %v319, %v401
    %v403 = vpop.f32.mrb[0].mxu0
    %404 = vdwg.mxu0
    %405 = vmatprep.subr.mxu0 0.0
    %v406 = vand.u32 %v45, 4294901760
    %v407 = vsub.f32 %v45, %v406
    %v408 = vand.u32 %v407, 4294901760
    %409 = vmatpush1.msra.mxu0 %v408
    %410 = vmatprep.subr.mxu0 0.0
    %v411 = vand.u32 %v63, 4294901760
    %v412 = vsub.f32 %v63, %v411
    %v413 = vand.u32 %v412, 4294901760
    %414 = vmatpush1.msra.mxu0 %v413
    %415 = vmatprep.subr.mxu0 0.0
    %416 = vmatpush1.msra.mxu0 0.0
    %417 = vmatprep.subr.mxu0 0.0
    %418 = vmatpush1.msra.mxu0 0.0
    %419 = vmatprep.subr.mxu0 0.0
    %420 = vmatpush1.msra.mxu0 0.0
    %421 = vmatprep.subr.mxu0 0.0
    %422 = vmatpush1.msra.mxu0 0.0
    %423 = vmatprep.subr.mxu0 0.0
    %424 = vmatpush1.msra.mxu0 0.0
    %425 = vmatprep.subr.mxu0 0.0
    %426 = vmatpush1.msra.mxu0 0.0
    %427 = vmatprep.subr.mxu0 0.0
    %428 = vmatpush1.msra.mxu0 0.0
    %429 = vmatprep.subr.mxu0 0.0
    %430 = vmatpush1.msra.mxu0 0.0
    %431 = vmatprep.subr.mxu0 0.0
    %432 = vmatpush1.msra.mxu0 0.0
    %433 = vmatprep.subr.mxu0 0.0
    %434 = vmatpush1.msra.mxu0 0.0
    %435 = vmatprep.subr.mxu0 0.0
    %436 = vmatpush1.msra.mxu0 0.0
    %437 = vmatprep.subr.mxu0 0.0
    %438 = vmatpush1.msra.mxu0 0.0
    %439 = vmatprep.subr.mxu0 0.0
    %440 = vmatpush1.msra.mxu0 0.0
    %441 = vmatprep.subr.mxu0 0.0
    %442 = vmatpush1.msra.mxu0 0.0
    %443 = vmatprep.subr.mxu0 0.0
    %444 = vmatpush1.msra.mxu0 0.0
    %445 = vmatprep.subr.mxu0 0.0
    %446 = vmatpush1.msra.mxu0 0.0
    %447 = vmatprep.subr.mxu0 0.0
    %448 = vmatpush1.msra.mxu0 0.0
    %449 = vmatprep.subr.mxu0 0.0
    %450 = vmatpush1.msra.mxu0 0.0
    %451 = vmatprep.subr.mxu0 0.0
    %452 = vmatpush1.msra.mxu0 0.0
    %453 = vmatprep.subr.mxu0 0.0
    %454 = vmatpush1.msra.mxu0 0.0
    %455 = vmatprep.subr.mxu0 0.0
    %456 = vmatpush1.msra.mxu0 0.0
    %457 = vmatprep.subr.mxu0 0.0
    %458 = vmatpush1.msra.mxu0 0.0
    %459 = vmatprep.subr.mxu0 0.0
    %460 = vmatpush1.msra.mxu0 0.0
    %461 = vmatprep.subr.mxu0 0.0
    %462 = vmatpush1.msra.mxu0 0.0
    %463 = vmatprep.subr.mxu0 0.0
    %464 = vmatpush1.msra.mxu0 0.0
    %465 = vmatprep.subr.mxu0 0.0
    %466 = vmatpush1.msra.mxu0 0.0
    %467 = vmatprep.subr.mxu0 0.0
    %468 = vmatpush1.msra.mxu0 0.0
    %469 = vmatprep.subr.mxu0 0.0
    %470 = vmatpush1.msra.mxu0 0.0
    %471 = vmatprep.subr.mxu0 0.0
    %472 = vmatpush1.msra.mxu0 0.0
    %473 = vmatprep.subr.mxu0 0.0
    %474 = vmatpush1.msra.mxu0 0.0
    %475 = vmatprep.mubr.f32.mxu0 0.0
    %v476 = vand.u32 %v56, 4294901760
    %477 = vmatmul.mubr.f32.gmra.mrb[0].mxu0 %v476
    %v478 = vpop.f32.mrb[0].mxu0
    %v479 = vadd.f32 %v394, %v478
    %v480 = vpop.f32.mrb[0].mxu0
    %481 = vmatprep.mubr.f32.mxu0 0.0
    %v482 = vand.u32 %v59, 4294901760
    %483 = vmatmul.mubr.f32.gmra.mrb[0].mxu0 %v482
    %v484 = vpop.f32.mrb[0].mxu0
    %v485 = vadd.f32 %v402, %v484
    %v486 = vpop.f32.mrb[0].mxu0
    %487 = vdwg.mxu0
    %488 = vmatprep.subr.mxu0 0.0
    %v489 = vand.u32 %v45, 4294901760
    %490 = vmatpush1.msra.mxu0 %v489
    %491 = vmatprep.subr.mxu0 0.0
    %v492 = vand.u32 %v63, 4294901760
    %493 = vmatpush1.msra.mxu0 %v492
    %494 = vmatprep.subr.mxu0 0.0
    %495 = vmatpush1.msra.mxu0 0.0
    %496 = vmatprep.subr.mxu0 0.0
    %497 = vmatpush1.msra.mxu0 0.0
    %498 = vmatprep.subr.mxu0 0.0
    %499 = vmatpush1.msra.mxu0 0.0
    %500 = vmatprep.subr.mxu0 0.0
    %501 = vmatpush1.msra.mxu0 0.0
    %502 = vmatprep.subr.mxu0 0.0
    %503 = vmatpush1.msra.mxu0 0.0
    %504 = vmatprep.subr.mxu0 0.0
    %505 = vmatpush1.msra.mxu0 0.0
    %506 = vmatprep.subr.mxu0 0.0
    %507 = vmatpush1.msra.mxu0 0.0
    %508 = vmatprep.subr.mxu0 0.0
    %509 = vmatpush1.msra.mxu0 0.0
    %510 = vmatprep.subr.mxu0 0.0
    %511 = vmatpush1.msra.mxu0 0.0
    %512 = vmatprep.subr.mxu0 0.0
    %513 = vmatpush1.msra.mxu0 0.0
    %514 = vmatprep.subr.mxu0 0.0
    %515 = vmatpush1.msra.mxu0 0.0
    %516 = vmatprep.subr.mxu0 0.0
    %517 = vmatpush1.msra.mxu0 0.0
    %518 = vmatprep.subr.mxu0 0.0
    %519 = vmatpush1.msra.mxu0 0.0
    %520 = vmatprep.subr.mxu0 0.0
    %521 = vmatpush1.msra.mxu0 0.0
    %522 = vmatprep.subr.mxu0 0.0
    %523 = vmatpush1.msra.mxu0 0.0
    %524 = vmatprep.subr.mxu0 0.0
    %525 = vmatpush1.msra.mxu0 0.0
    %526 = vmatprep.subr.mxu0 0.0
    %527 = vmatpush1.msra.mxu0 0.0
    %528 = vmatprep.subr.mxu0 0.0
    %529 = vmatpush1.msra.mxu0 0.0
    %530 = vmatprep.subr.mxu0 0.0
    %531 = vmatpush1.msra.mxu0 0.0
    %532 = vmatprep.subr.mxu0 0.0
    %533 = vmatpush1.msra.mxu0 0.0
    %534 = vmatprep.subr.mxu0 0.0
    %535 = vmatpush1.msra.mxu0 0.0
    %536 = vmatprep.subr.mxu0 0.0
    %537 = vmatpush1.msra.mxu0 0.0
    %538 = vmatprep.subr.mxu0 0.0
    %539 = vmatpush1.msra.mxu0 0.0
    %540 = vmatprep.subr.mxu0 0.0
    %541 = vmatpush1.msra.mxu0 0.0
    %542 = vmatprep.subr.mxu0 0.0
    %543 = vmatpush1.msra.mxu0 0.0
    %544 = vmatprep.subr.mxu0 0.0
    %545 = vmatpush1.msra.mxu0 0.0
    %546 = vmatprep.subr.mxu0 0.0
    %547 = vmatpush1.msra.mxu0 0.0
    %548 = vmatprep.subr.mxu0 0.0
    %549 = vmatpush1.msra.mxu0 0.0
    %550 = vmatprep.subr.mxu0 0.0
    %551 = vmatpush1.msra.mxu0 0.0
    %552 = vmatprep.subr.mxu0 0.0
    %553 = vmatpush1.msra.mxu0 0.0
    %554 = vmatprep.mubr.f32.mxu0 0.0
    %v555 = vand.u32 %v56, 4294901760
    %556 = vmatmul.mubr.f32.gmra.mrb[0].mxu0 %v555
    %v557 = vpop.f32.mrb[0].mxu0
    %v558 = vadd.f32 %v479, %v557
    %v559 = vpop.f32.mrb[0].mxu0
    %560 = vmatprep.mubr.f32.mxu0 0.0
    %v561 = vand.u32 %v59, 4294901760
    %562 = vmatmul.mubr.f32.gmra.mrb[0].mxu0 %v561
    %v563 = vpop.f32.mrb[0].mxu0
    %v564 = vadd.f32 %v485, %v563
    %v565 = vpop.f32.mrb[0].mxu0
    %566 = vdwg.mxu0
    %v567 = vadd.f32 %v558, %v43
    %v568 = vadd.f32 %v564, %v44
    %v569 = vmax.f32 %v567, 0.0
    %v570 = vmax.f32 %v568, 0.0
    %571 = vst.msk [vmem:[#allocation7] sm:$0xff] %vm54, %v569
    %572 = vst.msk [vmem:[#allocation7 + $0x8] sm:$0xff] %vm54, %v570
    // Predicated region
    $region22: #{tpu_custom_call.1} parent=1 // pred_check
      _
    $region23: #{tpu_custom_call.1} parent=1 // pred_check_branch
      %574 = sbr.rel (0) target = $region25
    $region24: #{tpu_custom_call.1} parent=1 // pred_region
      %s576 = ssub.s32 256, 256
      %577 = vsyncadd [#allocation4], %s576
      %s578 = sshll.u32 [#allocation7], 4
      %s579 = int_to_ptr.vmem [resolvable:$true] %s578
      %584 = dma.vmem_to_hbm [thread:$0]  %s579, 256, %s3, [#allocation4], 128, 128, 8
    $region25: #{tpu_custom_call.1} parent=1 // pred_fallthru
      _
    // Predicated region
    $region26: #{tpu_custom_call.1} parent=1 // pred_check
      _
    $region27: #{tpu_custom_call.1} parent=1 // pred_check_branch
      %586 = sbr.rel (0) target = $region29
    $region28: #{tpu_custom_call.1} parent=1 // pred_region
      %587 = dma.done [#allocation4], 256
    $region29: #{tpu_custom_call.1} parent=1 // pred_fallthru
      _
    %588 = vsyncpa [#allocation3], 1
    %589 = vsyncpa [#allocation6], 1
    %590 = vsyncpa [#allocation4], 1

</llo_original>
